<compile_context>
chip_gen: v5e
topology: v5e:2x2
jax: 0.10.0
libtpu: 0.0.40
codegen_flags: <defaults>
</compile_context>

<pallas_src>
import jax
import jax.numpy as jnp
from jax.experimental import pallas as pl
from jax.experimental.pallas import tpu as pltpu


def _group_pointwise_kernel(x_ref, w_ref, o_ref):
    # x_ref: (C, T)   activation columns, NCHW-native (no input transpose)
    # w_ref: (NP, C)  pre-transposed weight
    # o_ref: (NP, T)  lane-dense output block
    o_ref[...] = jnp.dot(
        w_ref[...], x_ref[...], preferred_element_type=jnp.float32
    ).astype(o_ref.dtype)


def _vmem_capacity_bytes():
    try:
        return int(pltpu.get_tpu_info().vmem_capacity_bytes)
    except Exception:
        # Assume the most restrictive generation (v7x: 64 MiB per TensorCore).
        return 64 * 1024 * 1024


def _choose_tile_hw(hw, c, np_, itemsize, batch, max_tile_hw):
    """Pick the spatial tile (lane dim of both the x and out blocks).

    Goals:
      * lane-aligned (multiple of 128) or the full spatial extent;
      * 2*x_block + 2*out_block + 2*weight fits a per-generation VMEM budget
        (v5e/v6e -> 48 MiB, v7x -> 32 MiB);
      * as large as possible, to amortize the ~0.35 us per-grid-step overhead;
      * but keep >= 2 total grid steps so both v7x TensorCores get work.
    """
    vmem_cap = _vmem_capacity_bytes()
    budget_total = min(48 * 1024 * 1024, vmem_cap // 2)

    # The weight block is grid-invariant but the default pipeliner still
    # allocates two buffers for it -> account for 2x.
    # TODO(synk): single-buffer the grid-invariant weight (pipeline_mode=
    # pl.Buffered(1) or a manual VMEM staging copy) to reclaim half of this.
    w_bytes = 2 * np_ * c * itemsize
    budget_xo = max(budget_total - w_bytes, 2 * 1024 * 1024)

    per_col = 2 * (c + np_) * itemsize          # x + out columns, double-buffered
    fit = max(128, (budget_xo // per_col) // 128 * 128)
    cap = min(max_tile_hw, fit)

    if hw <= cap:
        tile = hw                                # full extent: always a legal block
    else:
        # Prefer the largest 128-multiple <= cap that divides hw exactly
        # (no ragged block at all) ...
        tile = 0
        k = (cap // 128) * 128
        while k >= 128:
            if hw % k == 0:
                tile = k
                break
            k -= 128
        # ... otherwise the largest 128-multiple; the cdiv grid handles the
        # ragged last block with masked writes (no jnp.pad copy of x).
        if tile == 0:
            tile = (cap // 128) * 128

    # Megacore: a single-step grid would leave one v7x TensorCore idle.
    steps = -(-hw // tile)
    if batch * steps < 2 and hw >= 256:
        tile = ((hw + 1) // 2 + 127) // 128 * 128

    return tile


def group_pointwise(x, w, *, max_tile_hw=8192, native_layout=False):
    """GroupPointWise forward.

    x: (B, C, H, W) activations (NCHW, as the PyTorch module receives them).
    w: (C, heads, proj_channels // heads) weights.
    native_layout: if True, return the kernel-native (B, heads, P, H, W)
      layout (a free reshape of the kernel output) and skip the final
      (b,n,p,h,w)->(b,n,h,w,p) XLA transpose, which is otherwise a full extra
      HBM round trip of the output on this bandwidth-bound op.

    For the ~2x HBM-bandwidth win, pass bf16 x (and w) from the producer: the
    kernel computes in the input dtype with f32 MXU accumulation and returns
    x.dtype.

    Returns (B, heads, H, W, P) in x.dtype (or (B, heads, P, H, W) when
    native_layout=True).
    """
    B, C, H, W = x.shape
    Cw, n_heads, p = w.shape
    assert Cw == C, (Cw, C)
    NP = n_heads * p
    HW = H * W

    # Free reshape: NCHW -> (B, C, H*W). No data movement.
    x3d = x.reshape(B, C, HW)
    # Tiny one-off weight transpose: (C, N, P) -> (C, NP) -> (NP, C).
    wt = w.reshape(C, NP).T.astype(x.dtype)

    itemsize = jnp.dtype(x3d.dtype).itemsize
    tile_hw = _choose_tile_hw(HW, C, NP, itemsize, B, max_tile_hw)
    n_tiles = pl.cdiv(HW, tile_hw)

    # Explicit VMEM limit from the real footprint:
    #   2 x-blocks + 2 out-blocks + 2 weight buffers (+ margin for internal
    #   scratch).  Keeps the large-tile path available on v5e (16 MiB scoped
    #   default) and stays well inside v7x's 64 MiB physical VMEM.
    footprint = 2 * tile_hw * (C + NP) * itemsize + 2 * NP * C * itemsize
    vmem_limit = int(min(_vmem_capacity_bytes() * 9 // 10,
                         max(footprint + 4 * 1024 * 1024, 16 * 1024 * 1024)))

    cost = pl.CostEstimate(
        flops=2 * B * HW * C * NP,
        transcendentals=0,
        bytes_accessed=itemsize * (B * HW * (C + NP) + C * NP),
    )

    # TODO(synk): if (C, tile_hw) + 2*(NP, C) ever cannot fit VMEM (huge C*NP,
    # most likely on v7x), add a K/C-split grid axis ("arbitrary") with an f32
    # VMEM accumulator purely as a fit fallback -- not for performance (the op
    # is HBM-bound, far below the MXU roofline).
    out3d = pl.pallas_call(
        _group_pointwise_kernel,
        out_shape=jax.ShapeDtypeStruct((B, NP, HW), x.dtype),
        grid=(B, n_tiles),
        in_specs=[
            # Batch dim squeezed out of the kernel ref.
            pl.BlockSpec((None, C, tile_hw), lambda b, t: (b, 0, t)),
            # Grid-invariant weight block.
            pl.BlockSpec((NP, C), lambda b, t: (0, 0)),
        ],
        out_specs=pl.BlockSpec((None, NP, tile_hw), lambda b, t: (b, 0, t)),
        compiler_params=pltpu.CompilerParams(
            dimension_semantics=("parallel", "parallel"),
            vmem_limit_bytes=vmem_limit,
        ),
        cost_estimate=cost,
    )(x3d, wt)

    # (B, N*P, H*W) -> (B, N, P, H, W): free reshape, no data movement.
    out = out3d.reshape(B, n_heads, p, H, W)
    if native_layout:
        return out
    # Module layout 'bnhwp': this permute is a full output HBM round trip;
    # consumers that can take the native layout should set native_layout=True.
    return jnp.transpose(out, (0, 1, 3, 4, 2))


def group_pointwise_ref(x, w):
    x_nhwc = jnp.transpose(x, (0, 2, 3, 1)).astype(jnp.float32)
    return jnp.einsum("bhwc,cnp->bnhwp", x_nhwc, w.astype(jnp.float32),
                      precision=jax.lax.Precision.HIGHEST)


if __name__ == "__main__":
    key = jax.random.PRNGKey(0)
    kx, kw = jax.random.split(key)

    run = jax.jit(group_pointwise,
                  static_argnames=("max_tile_hw", "native_layout"))

    # 1) Module-default shapes: in_channels=32, heads=4, proj_factor=1 -> p=8.
    B, C, H, W = 2, 32, 16, 16
    heads, p = 4, 8
    x = jax.random.normal(kx, (B, C, H, W), dtype=jnp.float32)
    w = 0.01 * jax.random.normal(kw, (C, heads, p), dtype=jnp.float32)  # std=0.01
    out = jax.block_until_ready(run(x, w))
    ref = group_pointwise_ref(x, w)
    assert out.shape == (B, heads, H, W, p), out.shape
    assert jnp.allclose(out, ref, atol=2e-3, rtol=2e-2)

    # 2) Unaligned spatial extent (7x11 board) -> full-extent (non-128) blocks.
    x2 = jax.random.normal(kx, (3, C, 7, 11), dtype=jnp.float32)
    out2 = jax.block_until_ready(run(x2, w))
    ref2 = group_pointwise_ref(x2, w)
    assert out2.shape == (3, heads, 7, 11, p), out2.shape
    assert jnp.allclose(out2, ref2, atol=2e-3, rtol=2e-2)

    # 3) Ragged-tile path: force a small tile so the last spatial block is partial.
    x3 = jax.random.normal(kx, (1, C, 20, 20), dtype=jnp.float32)
    out3 = jax.block_until_ready(run(x3, w, max_tile_hw=128))
    ref3 = group_pointwise_ref(x3, w)
    assert jnp.allclose(out3, ref3, atol=2e-3, rtol=2e-2)

    # 4) bf16 end-to-end (the recommended bandwidth-saving path).
    outb = jax.block_until_ready(run(x.astype(jnp.bfloat16), w.astype(jnp.bfloat16)))
    assert outb.dtype == jnp.bfloat16
    assert jnp.allclose(outb.astype(jnp.float32), ref, atol=1e-2, rtol=1e-1)

    # 5) Kernel-native layout (skips the epilogue transpose entirely).
    outn = jax.block_until_ready(run(x, w, native_layout=True))
    assert outn.shape == (B, heads, p, H, W), outn.shape
    assert jnp.allclose(jnp.transpose(outn, (0, 1, 3, 4, 2)), ref, atol=2e-3, rtol=2e-2)

    print("KERNEL_OK")
</pallas_src>

<mosaic_0001>
module attributes {stable_mosaic.version = 11 : i64} {
  func.func @_group_pointwise_kernel(%arg0: i32, %arg1: i32, %arg2: memref<1x32x256xf32, #tpu.memory_space<vmem>>, %arg3: memref<32x32xf32, #tpu.memory_space<vmem>>, %arg4: memref<1x32x256xf32, #tpu.memory_space<vmem>>) attributes {dimension_semantics = [#tpu.dimension_semantics<parallel>, #tpu.dimension_semantics<parallel>], iteration_bounds = array<i64: 2, 1>, scalar_prefetch = 0 : i64, scratch_operands = 0 : i64, tpu.core_type = #tpu.core_type<tc>, window_params = [{transform_indices = @transform_0, window_bounds = array<i64: 1, 32, 256>}, {pipeline_mode = #tpu.pipeline_mode<synchronous>, transform_indices = @transform_1, window_bounds = array<i64: 32, 32>}, {transform_indices = @transform_2, window_bounds = array<i64: 1, 32, 256>}]} {
    %c0 = arith.constant 0 : index
    %c0_0 = arith.constant 0 : index
    %0 = vector.load %arg3[%c0, %c0_0] : memref<32x32xf32, #tpu.memory_space<vmem>>, vector<32x32xf32>
    %c0_1 = arith.constant 0 : index
    %c0_2 = arith.constant 0 : index
    %c0_3 = arith.constant 0 : index
    %1 = vector.load %arg2[%c0_1, %c0_2, %c0_3] : memref<1x32x256xf32, #tpu.memory_space<vmem>>, vector<1x32x256xf32>
    %2 = vector.shape_cast %1 : vector<1x32x256xf32> to vector<32x256xf32>
    %cst = arith.constant dense<0.000000e+00> : vector<32x256xf32>
    %3 = tpu.matmul %0, %2, %cst {dimension_numbers = #tpu.dot_dimension_numbers<[1], [0], [0], [1], [0, 0, 1, 1], [], []>} : vector<32x32xf32>, vector<32x256xf32>, vector<32x256xf32> -> vector<32x256xf32>
    %c0_4 = arith.constant 0 : index
    %c0_5 = arith.constant 0 : index
    %c0_6 = arith.constant 0 : index
    %4 = vector.load %arg4[%c0_4, %c0_5, %c0_6] : memref<1x32x256xf32, #tpu.memory_space<vmem>>, vector<1x32x256xf32>
    %5 = vector.shape_cast %4 : vector<1x32x256xf32> to vector<32x256xf32>
    %6 = vector.shape_cast %3 : vector<32x256xf32> to vector<1x32x256xf32>
    tpu.vector_store %arg4[%c0_4, %c0_5, %c0_6], %6 {strides = array<i32>} : memref<1x32x256xf32, #tpu.memory_space<vmem>>, vector<1x32x256xf32>,
    return
  }
  func.func @transform_0(%arg0: i32, %arg1: i32) -> (i32, i32, i32) {
    %c0_i32 = arith.constant 0 : i32
    %c0_i32_0 = arith.constant 0 : i32
    return %arg0, %c0_i32, %arg1 : i32, i32, i32
  }
  func.func @transform_1(%arg0: i32, %arg1: i32) -> (i32, i32) {
    %c0_i32 = arith.constant 0 : i32
    %c0_i32_0 = arith.constant 0 : i32
    %c0_i32_1 = arith.constant 0 : i32
    return %c0_i32, %c0_i32_0 : i32, i32
  }
  func.func @transform_2(%arg0: i32, %arg1: i32) -> (i32, i32, i32) {
    %c0_i32 = arith.constant 0 : i32
    %c0_i32_0 = arith.constant 0 : i32
    return %arg0, %c0_i32, %arg1 : i32, i32, i32
  }
}

</mosaic_0001>

<llo_original>
// kernel: group_pointwise.1
$region0: #{group_pointwise.1}
  #allocation0 [shape = 'u32[]', space=smem, size = 0x4, offset = 0x4, fixed_abs, tag = 'smem constant byte address 0x4 - core index']
  #allocation1 [shape = 'u32[72,128]{1,0:T(1,128)}', space=vmem, size = 0x9000, scoped, tag = 'internal scratch']
  %s0 = inlined_call_operand.vmem [shape: f32[2,32,256], index: 0, kind: input, shape index: {}]
  %s1 = inlined_call_operand.vmem [shape: f32[32,32], index: 1, kind: input, shape index: {}]
  %s2 = inlined_call_operand.vmem [shape: f32[2,32,256], index: 2, kind: output, shape index: {}]
  %s3 = sld [smem:[#allocation0]]
  $region41: #{group_pointwise.1} parent=0
    _
  %s5 = ssub.s32 1, %s3
  %s6 = scalar_select 0, %s5, %s3
  loop: start=0, step=1, limit=4
  $region2: #{group_pointwise.1} parent=0 // loop_pre_header
    _
  $region3: #{group_pointwise.1} parent=0 // loop_header
    %s8 = sphi 0, %s12
    %p9 = scmp.ge.s32.totalorder %s8, 4
    %s15 = sphi 0, %s27
    %s16 = sphi 0, %s23
    %s17 = sphi 0, %s15
    %s18 = sphi 0, %s16
    %s19 = sphi 0, %s17
    %s20 = sphi 0, %s18
    %s32 = sphi 0, %s34
    %s35 = sphi 0, %s32
    %s36 = sphi 0, %s35
    %s52 = sphi 0, %s36
    %s56 = sphi 0, %s56
    %s58 = sphi 0, %s56
    %s59 = sphi 0, %s58
    %s73 = sphi 0, %s59
    %s81 = sphi 0, %s83
    %s84 = sphi 0, %s81
    %s85 = sphi 0, %s84
    %s101 = sphi 0, %s85
  $region4: #{group_pointwise.1} parent=0 // loop_header_branch
    %11 = sbr.rel (%p9) target = $region8
  $region5: #{group_pointwise.1} parent=0 // loop_body
    %s13 = ssub.s32 %s8, 1
    %s14 = ssub.s32 %s8, 2
    %s21 = sadd.s32 1, %s16
    %p22 = scmp.ge.s32.totalorder %s21, 1
    %s23 = scalar_select %p22, 0, %s21
    %s24 = sadd.s32 1, %s15
    %s25 = scalar_select %p22, %s24, %s15
    %p26 = scmp.ge.s32.totalorder %s25, 2
    %s27 = scalar_select %p26, 0, %s25
    %s28 = ssub.s32 %s15, %s27
    %s29 = ssub.s32 %s16, %s23
    %s30 = sor.u32 %s28, %s29
    %p31 = scmp.eq.s32.totalorder %s30, 0
    %s33 = sadd.s32 %s32, 1
    %s34 = scalar_select %p31, %s32, %s33
    %p37 = pneg %p31
    %p38 = scmp.eq.s32.totalorder %s8, 1
    %p39 = por %p37, %p38
    %p40 = scmp.ne.s32.totalorder %s32, %s35
    %p41 = scmp.eq.s32.totalorder %s8, 0
    %p42 = por %p40, %p41
    %p43 = scmp.ne.s32.totalorder %s32, %s35
    %p44 = scmp.eq.s32.totalorder %s13, 1
    %p45 = por %p43, %p44
    %p46 = scmp.ne.s32.totalorder %s35, %s36
    %p47 = scmp.eq.s32.totalorder %s13, 0
    %p48 = por %p46, %p47
    %p49 = scmp.ne.s32.totalorder %s35, %s36
    %p50 = scmp.eq.s32.totalorder %s14, 1
    %p51 = por %p49, %p50
    %p53 = scmp.ne.s32.totalorder %s36, %s52
    %p54 = scmp.eq.s32.totalorder %s14, 0
    %p55 = por %p53, %p54
    %s57 = sadd.s32 %s56, 1
    %p60 = scmp.eq.s32.totalorder %s8, 1
    %p61 = scmp.ne.s32.totalorder %s56, %s58
    %p62 = scmp.eq.s32.totalorder %s8, 0
    %p63 = por %p61, %p62
    %p64 = scmp.ne.s32.totalorder %s56, %s58
    %p65 = scmp.eq.s32.totalorder %s13, 1
    %p66 = por %p64, %p65
    %p67 = scmp.ne.s32.totalorder %s58, %s59
    %p68 = scmp.eq.s32.totalorder %s13, 0
    %p69 = por %p67, %p68
    %p70 = scmp.ne.s32.totalorder %s58, %s59
    %p71 = scmp.eq.s32.totalorder %s14, 1
    %p72 = por %p70, %p71
    %p74 = scmp.ne.s32.totalorder %s59, %s73
    %p75 = scmp.eq.s32.totalorder %s14, 0
    %p76 = por %p74, %p75
    %s77 = ssub.s32 %s15, %s27
    %s78 = ssub.s32 %s16, %s23
    %s79 = sor.u32 %s77, %s78
    %p80 = scmp.eq.s32.totalorder %s79, 0
    %s82 = sadd.s32 %s81, 1
    %s83 = scalar_select %p80, %s81, %s82
    %p86 = pneg %p80
    %p87 = scmp.eq.s32.totalorder %s8, 1
    %p88 = por %p86, %p87
    %p89 = scmp.ne.s32.totalorder %s81, %s84
    %p90 = scmp.eq.s32.totalorder %s8, 0
    %p91 = por %p89, %p90
    %p92 = scmp.ne.s32.totalorder %s81, %s84
    %p93 = scmp.eq.s32.totalorder %s13, 1
    %p94 = por %p92, %p93
    %p95 = scmp.ne.s32.totalorder %s84, %s85
    %p96 = scmp.eq.s32.totalorder %s13, 0
    %p97 = por %p95, %p96
    %p98 = scmp.ne.s32.totalorder %s84, %s85
    %p99 = scmp.eq.s32.totalorder %s14, 1
    %p100 = por %p98, %p99
    %p102 = scmp.ne.s32.totalorder %s85, %s101
    %p103 = scmp.eq.s32.totalorder %s14, 0
    %p104 = por %p102, %p103
    %p105 = scmp.le.s32.totalorder 1, %s8
    %p106 = scmp.lt.s32.totalorder %s8, 3
    %p107 = pnand %p105, %p106
    %p108 = pneg %p107
    // Predicated region
    $region9: #{group_pointwise.1} parent=5 // pred_check
      _
    $region10: #{group_pointwise.1} parent=5 // pred_check_branch
      %110 = sbr.rel (%p107) target = $region12
    $region11: #{group_pointwise.1} parent=5 // pred_region
      %s111 = ssub.s32 %s8, 1
      // Predicated region
      $region13: #{group_pointwise.1} parent=11 // pred_check
        %p112 = pneg %p69
      $region14: #{group_pointwise.1} parent=11 // pred_check_branch
        %114 = sbr.rel (%p112) target = $region16
      $region15: #{group_pointwise.1} parent=11 // pred_region
        _
      $region16: #{group_pointwise.1} parent=11 // pred_fallthru
        _
    $region12: #{group_pointwise.1} parent=5 // pred_fallthru
      _
    %p115 = scmp.lt.s32.totalorder %s8, 2
    // Predicated region
    $region17: #{group_pointwise.1} parent=5 // pred_check
      %p116 = pneg %p115
    $region18: #{group_pointwise.1} parent=5 // pred_check_branch
      %118 = sbr.rel (%p116) target = $region20
    $region19: #{group_pointwise.1} parent=5 // pred_region
      // Predicated region
      $region21: #{group_pointwise.1} parent=19 // pred_check
        %p119 = pneg %p42
      $region22: #{group_pointwise.1} parent=19 // pred_check_branch
        %121 = sbr.rel (%p119) target = $region24
      $region23: #{group_pointwise.1} parent=19 // pred_region
        %s122 = smul.u32 2, %s16
        %p123 = scmp.lt.s32.totalorder %s15, 1
        %s124 = scalar_select %p123, %s15, 1
        %p125 = scmp.lt.s32.totalorder %s122, 1
        %s126 = scalar_select %p125, %s122, 1
        %s127 = smul.addr %s124, 8
        %s128 = sadd.s32 %s126, %s127
        %s129 = smul.addr %s128, 8
        %s130 = scalar_lea.vmem %s0, %s129
        %s131 = smul.u32 2, %s16
      $region24: #{group_pointwise.1} parent=19 // pred_fallthru
        _
    $region20: #{group_pointwise.1} parent=5 // pred_fallthru
      _
    %p132 = scmp.le.s32.totalorder 1, %s8
    %p133 = scmp.lt.s32.totalorder %s8, 3
    %p134 = pnand %p132, %p133
    %p135 = pneg %p134
    // Predicated region
    $region25: #{group_pointwise.1} parent=5 // pred_check
      _
    $region26: #{group_pointwise.1} parent=5 // pred_check_branch
      %137 = sbr.rel (%p134) target = $region28
    $region27: #{group_pointwise.1} parent=5 // pred_region
      %s138 = ssub.s32 %s8, 1
      %s139 = smul.u32 2, %s18
      %p140 = scmp.lt.s32.totalorder %s17, 1
      %s141 = scalar_select %p140, %s17, 1
      %p142 = scmp.lt.s32.totalorder %s139, 1
      %s143 = scalar_select %p142, %s139, 1
      %s144 = smul.addr %s141, 8
      %s145 = sadd.s32 %s143, %s144
      %s146 = smul.addr %s145, 8
      %s147 = scalar_lea.vmem %s0, %s146
      %p148 = pneg %p48
      %p149 = pneg %p45
      %p150 = pneg %p69
      %p151 = pneg %p66
      %p152 = pneg %p97
      %p153 = pneg %p94
      %s154 = smul.u32 2, %s18
      %p155 = scmp.lt.s32.totalorder %s17, 1
      %s156 = scalar_select %p155, %s17, 1
      %p157 = scmp.lt.s32.totalorder %s154, 1
      %s158 = scalar_select %p157, %s154, 1
      %s159 = smul.addr %s156, 8
      %s160 = sadd.s32 %s158, %s159
      %s161 = smul.addr %s160, 8
      %s162 = scalar_lea.vmem %s2, %s161
      %s163 = smul.u32 2, %s18
      %p164 = scmp.lt.s32.totalorder %s17, 1
      %s165 = scalar_select %p164, %s17, 1
      %p166 = scmp.lt.s32.totalorder %s163, 1
      %s167 = scalar_select %p166, %s163, 1
      %s168 = smul.addr %s165, 8
      %s169 = sadd.s32 %s167, %s168
      %s170 = smul.addr %s169, 8
      %s171 = scalar_lea.vmem %s0, %s170
      %s172 = smul.u32 2, %s18
      %s173 = smul.u32 2, %s18
      %p174 = scmp.lt.s32.totalorder %s17, 1
      %s175 = scalar_select %p174, %s17, 1
      %p176 = scmp.lt.s32.totalorder %s173, 1
      %s177 = scalar_select %p176, %s173, 1
      %s178 = smul.addr %s175, 8
      %s179 = sadd.s32 %s177, %s178
      %s180 = smul.addr %s179, 8
      %s181 = scalar_lea.vmem %s2, %s180
      %s182 = smul.u32 2, %s18
      %v183 = vld [vmem:[%s1] sm:$0xff]
      %v184 = vld [vmem:[%s1 + $0x8] sm:$0xff]
      %v185 = vld [vmem:[%s1 + $0x10] sm:$0xff]
      %v186 = vld [vmem:[%s1 + $0x18] sm:$0xff]
      %v187 = vld [vmem:[%s171] sm:$0xff]
      %v188 = vld [vmem:[%s171 + $0x8] sm:$0xff]
      %v189 = vld [vmem:[%s171 + $0x10] sm:$0xff]
      %v190 = vld [vmem:[%s171 + $0x18] sm:$0xff]
      %v191 = vld [vmem:[%s171 + $0x20] sm:$0xff]
      %v192 = vld [vmem:[%s171 + $0x28] sm:$0xff]
      %v193 = vld [vmem:[%s171 + $0x30] sm:$0xff]
      %v194 = vld [vmem:[%s171 + $0x38] sm:$0xff]
      %vm195 = vcmask 261120
      %v197 = vsel %vm195, %v183, 0
      %v200 = vsel %vm195, %v184, 0
      %v203 = vsel %vm195, %v185, 0
      %v206 = vsel %vm195, %v186, 0
      %208 = vmatpush.msra.mxu0 0.0
      %209 = vmatpush.msra.mxu0 0.0
      %210 = vmatpush.msra.mxu0 0.0
      %211 = vmatpush.msra.mxu0 0.0
      %212 = vmatpush.msra.mxu0 0.0
      %213 = vmatpush.msra.mxu0 0.0
      %214 = vmatpush.msra.mxu0 0.0
      %215 = vmatpush.msra.mxu0 0.0
      %216 = vmatpush.msra.mxu0 0.0
      %217 = vmatpush.msra.mxu0 0.0
      %218 = vmatpush.msra.mxu0 0.0
      %219 = vmatpush.msra.mxu0 0.0
      %220 = vmatpush.msra.mxu0 %v193
      %221 = vmatpush.msra.mxu0 %v191
      %222 = vmatpush.msra.mxu0 %v189
      %223 = vmatpush.msra.mxu0 %v187
      %224 = vmatmul.f32.gmra.mxu0 %v197
      %v225 = vpop.f32.mrf.mxu0
      %v226 = vadd.f32 0.0, %v225
      %227 = vmatmul.f32.gmra.mxu0 %v200
      %v228 = vpop.f32.mrf.mxu0
      %v229 = vadd.f32 0.0, %v228
      %230 = vmatmul.f32.gmra.mxu0 %v203
      %v231 = vpop.f32.mrf.mxu0
      %v232 = vadd.f32 0.0, %v231
      %233 = vmatmul.f32.gmra.mxu0 %v206
      %v234 = vpop.f32.mrf.mxu0
      %v235 = vadd.f32 0.0, %v234
      %236 = vdwg.mxu0
      %237 = vmatpush.msra.mxu0 0.0
      %238 = vmatpush.msra.mxu0 0.0
      %239 = vmatpush.msra.mxu0 0.0
      %240 = vmatpush.msra.mxu0 0.0
      %241 = vmatpush.msra.mxu0 0.0
      %242 = vmatpush.msra.mxu0 0.0
      %243 = vmatpush.msra.mxu0 0.0
      %244 = vmatpush.msra.mxu0 0.0
      %245 = vmatpush.msra.mxu0 0.0
      %246 = vmatpush.msra.mxu0 0.0
      %247 = vmatpush.msra.mxu0 0.0
      %248 = vmatpush.msra.mxu0 0.0
      %249 = vmatpush.msra.mxu0 %v194
      %250 = vmatpush.msra.mxu0 %v192
      %251 = vmatpush.msra.mxu0 %v190
      %252 = vmatpush.msra.mxu0 %v188
      %253 = vmatmul.f32.gmra.mxu0 %v197
      %v254 = vpop.f32.mrf.mxu0
      %v255 = vadd.f32 0.0, %v254
      %256 = vmatmul.f32.gmra.mxu0 %v200
      %v257 = vpop.f32.mrf.mxu0
      %v258 = vadd.f32 0.0, %v257
      %259 = vmatmul.f32.gmra.mxu0 %v203
      %v260 = vpop.f32.mrf.mxu0
      %v261 = vadd.f32 0.0, %v260
      %262 = vmatmul.f32.gmra.mxu0 %v206
      %v263 = vpop.f32.mrf.mxu0
      %v264 = vadd.f32 0.0, %v263
      %265 = vdwg.mxu0
      %266 = vst [vmem:[%s181] sm:$0xff] %v226
      %267 = vst [vmem:[%s181 + $0x8] sm:$0xff] %v255
      %268 = vst [vmem:[%s181 + $0x10] sm:$0xff] %v229
      %269 = vst [vmem:[%s181 + $0x18] sm:$0xff] %v258
      %270 = vst [vmem:[%s181 + $0x20] sm:$0xff] %v232
      %271 = vst [vmem:[%s181 + $0x28] sm:$0xff] %v261
      %272 = vst [vmem:[%s181 + $0x30] sm:$0xff] %v235
      %273 = vst [vmem:[%s181 + $0x38] sm:$0xff] %v264
      %s274 = smul.u32 2, %s18
      %p275 = scmp.lt.s32.totalorder %s17, 1
      %s276 = scalar_select %p275, %s17, 1
      %p277 = scmp.lt.s32.totalorder %s274, 1
      %s278 = scalar_select %p277, %s274, 1
      %s279 = smul.addr %s276, 8
      %s280 = sadd.s32 %s278, %s279
      %s281 = smul.addr %s280, 8
      %s282 = scalar_lea.vmem %s2, %s281
      // Predicated region
      $region29: #{group_pointwise.1} parent=27 // pred_check
        %p283 = pneg %p94
      $region30: #{group_pointwise.1} parent=27 // pred_check_branch
        %285 = sbr.rel (%p283) target = $region32
      $region31: #{group_pointwise.1} parent=27 // pred_region
        %s286 = smul.u32 2, %s18
      $region32: #{group_pointwise.1} parent=27 // pred_fallthru
        _
    $region28: #{group_pointwise.1} parent=5 // pred_fallthru
      _
    %p287 = scmp.le.s32.totalorder 2, %s8
    // Predicated region
    $region33: #{group_pointwise.1} parent=5 // pred_check
      %p288 = pneg %p287
    $region34: #{group_pointwise.1} parent=5 // pred_check_branch
      %290 = sbr.rel (%p288) target = $region36
    $region35: #{group_pointwise.1} parent=5 // pred_region
      %s291 = ssub.s32 %s8, 2
      // Predicated region
      $region37: #{group_pointwise.1} parent=35 // pred_check
        %p292 = pneg %p100
      $region38: #{group_pointwise.1} parent=35 // pred_check_branch
        %294 = sbr.rel (%p292) target = $region40
      $region39: #{group_pointwise.1} parent=35 // pred_region
        %s295 = smul.u32 2, %s20
        %p296 = scmp.lt.s32.totalorder %s19, 1
        %s297 = scalar_select %p296, %s19, 1
        %p298 = scmp.lt.s32.totalorder %s295, 1
        %s299 = scalar_select %p298, %s295, 1
        %s300 = smul.addr %s297, 8
        %s301 = sadd.s32 %s299, %s300
        %s302 = smul.addr %s301, 8
        %s303 = scalar_lea.vmem %s2, %s302
      $region40: #{group_pointwise.1} parent=35 // pred_fallthru
        _
    $region36: #{group_pointwise.1} parent=5 // pred_fallthru
      _
  $region6: #{group_pointwise.1} parent=0 // loop_footer
    %s12 = sadd.s32 1, %s8
  $region7: #{group_pointwise.1} parent=0 // loop_footer_branch
    %7 = sbr.rel target = $region3
  $region8: #{group_pointwise.1} parent=0 // loop_exit
    _

</llo_original>
